<compile_context>
chip_gen: v7x
topology: tpu7x:2x2x1
jax: 0.10.0
libtpu: 0.0.40
codegen_flags: <defaults>
</compile_context>

<pallas_src>
import jax
import jax.numpy as jnp
from jax import lax
from jax.experimental import pallas as pl
from jax.experimental.pallas import tpu as pltpu

_EPS = 1e-5      # nn.LayerNorm default eps
_LANES = 128     # TPU vreg lane width


def _cdiv(a, b):
    return -(-a // b)


def _round_up(a, b):
    return _cdiv(a, b) * b


def _make_dual_layernorm_kernel(dim, lane_width):
    """dim: LayerNorm feature size. lane_width: last dim of the VMEM blocks
    (== dim for the plain path, or 128 with g = 128 // dim rows packed per
    block row for the lane-packed path)."""
    packed = lane_width != dim
    inv_dim = 1.0 / float(dim)

    def kernel(x1_ref, x2_ref, w1_ref, b1_ref, w2_ref, b2_ref, y1_ref, y2_ref):
        if packed:
            # In-lane segmented butterfly all-reduce: after log2(dim) steps each
            # lane holds the sum of its own dim-wide segment. Partner-selection
            # masks are derived from a rolled iota, so correctness does not
            # depend on pltpu.roll's rotation-direction convention.
            lane = lax.broadcasted_iota(jnp.int32, x1_ref.shape, 1)
            butterfly = []
            d = 1
            while d < dim:
                takes_a = pltpu.roll(lane, d, axis=1) == (lane ^ d)
                butterfly.append((d, takes_a))
                d *= 2

            def seg_sum(v):
                s = v
                for dist, takes_a in butterfly:
                    rot_a = pltpu.roll(s, dist, axis=1)
                    rot_b = pltpu.roll(s, lane_width - dist, axis=1)
                    s = s + jnp.where(takes_a, rot_a, rot_b)
                return s  # (rows, lane_width): every lane holds its segment sum
        else:
            def seg_sum(v):
                return jnp.sum(v, axis=-1, keepdims=True)

        def layernorm(x, w, b):
            x = x.astype(jnp.float32)
            mean = seg_sum(x) * inv_dim
            centered = x - mean
            var = seg_sum(centered * centered) * inv_dim
            return centered * lax.rsqrt(var + _EPS) * w + b

        y1_ref[...] = layernorm(x1_ref[...], w1_ref[...], b1_ref[...]).astype(y1_ref.dtype)
        y2_ref[...] = layernorm(x2_ref[...], w2_ref[...], b2_ref[...]).astype(y2_ref.dtype)

    return kernel


def _vmem_budget():
    """(bytes for pipelined blocks, vmem_limit_bytes), per TPU generation."""
    try:
        cap = int(pltpu.get_tpu_info().vmem_capacity_bytes)
    except Exception:
        cap = 64 * 1024 * 1024  # conservative fallback (v7x per-TensorCore VMEM)
    cap = max(32 * 1024 * 1024, min(cap, 128 * 1024 * 1024))
    return cap // 2, (cap * 3) // 4


def _choose_tile(packed_rows, lane_width, itemsize, block_budget):
    # Sublane multiple so blocks obey the (8,128) / packed-dtype tiling rule.
    sub = {4: 8, 2: 16, 1: 32}.get(itemsize, 8)
    # 4 pipelined arrays (x1, x2, y1, y2), each double-buffered by Pallas.
    per_row = 4 * 2 * lane_width * itemsize
    tile = min(4096, max(sub, block_budget // per_row))
    tile = max(sub, (tile // sub) * sub)
    if packed_rows <= tile:
        return _round_up(packed_rows, sub)
    # Same number of grid steps, but balance blocks to minimize padding.
    steps = _cdiv(packed_rows, tile)
    return _round_up(_cdiv(packed_rows, steps), sub)


def _dual_layernorm(x1, x2, w1, b1, w2, b2):
    """Fused LayerNorm of two independent [..., D] inputs over the last axis."""
    assert x1.shape == x2.shape
    orig_shape = x1.shape
    dim = orig_shape[-1]
    rows = 1
    for s in orig_shape[:-1]:
        rows *= s

    # Lane packing for small dims (keeps every vst/vld fully lane dense).
    if dim < _LANES and _LANES % dim == 0:
        g = _LANES // dim
    else:
        g = 1
    lane_width = g * dim

    itemsize = jnp.dtype(x1.dtype).itemsize
    block_budget, vmem_limit = _vmem_budget()
    packed_rows = _cdiv(rows, g)
    tile = _choose_tile(packed_rows, lane_width, itemsize, block_budget)
    steps = _cdiv(packed_rows, tile)
    rows_needed = steps * tile * g

    x1f = x1.reshape(rows, dim)
    x2f = x2.reshape(rows, dim)
    pad = rows_needed - rows
    if pad:
        x1f = jnp.pad(x1f, ((0, pad), (0, 0)))
        x2f = jnp.pad(x2f, ((0, pad), (0, 0)))
    x1p = x1f.reshape(rows_needed // g, lane_width)
    x2p = x2f.reshape(rows_needed // g, lane_width)

    def prep(p):
        p = jnp.asarray(p, jnp.float32).reshape(1, dim)
        return jnp.tile(p, (1, g)) if g > 1 else p

    w1p, b1p, w2p, b2p = prep(w1), prep(b1), prep(w2), prep(b2)

    row_spec = pl.BlockSpec((tile, lane_width), lambda i: (i, 0))
    par_spec = pl.BlockSpec((1, lane_width), lambda i: (0, 0))

    y1p, y2p = pl.pallas_call(
        _make_dual_layernorm_kernel(dim, lane_width),
        out_shape=(
            jax.ShapeDtypeStruct(x1p.shape, x1.dtype),
            jax.ShapeDtypeStruct(x2p.shape, x2.dtype),
        ),
        grid=(steps,),
        in_specs=[row_spec, row_spec, par_spec, par_spec, par_spec, par_spec],
        out_specs=(row_spec, row_spec),
        compiler_params=pltpu.CompilerParams(
            dimension_semantics=("parallel",),
            vmem_limit_bytes=vmem_limit,
        ),
    )(x1p, x2p, w1p, b1p, w2p, b2p)

    y1 = y1p.reshape(rows_needed, dim)[:rows].reshape(orig_shape)
    y2 = y2p.reshape(rows_needed, dim)[:rows].reshape(orig_shape)
    return y1, y2


class PreNorm2in:
    """JAX/Pallas port of the PyTorch PreNorm2in module."""

    def __init__(self, dim, fn, key=None):
        if key is None:
            key = jax.random.PRNGKey(0)
        k1, k2, k3, k4 = jax.random.split(key, 4)
        # PyTorch default init is weight=1, bias=0; perturb so the affine path
        # is actually exercised by the numerical check.
        self.w1 = 1.0 + 0.05 * jax.random.normal(k1, (dim,), jnp.float32)
        self.b1 = 0.05 * jax.random.normal(k2, (dim,), jnp.float32)
        self.w2 = 1.0 + 0.05 * jax.random.normal(k3, (dim,), jnp.float32)
        self.b2 = 0.05 * jax.random.normal(k4, (dim,), jnp.float32)
        # TODO(synk): fn is an arbitrary user sub-module (cross-attention in
        # SAMUS); it is applied as a plain JAX callable outside the kernel.
        self.fn = fn

    def __call__(self, x1, x2, **kwargs):
        n1, n2 = _dual_layernorm(x1, x2, self.w1, self.b1, self.w2, self.b2)
        return self.fn(n1, n2, **kwargs)


def _reference(x1, x2, w1, b1, w2, b2, fn):
    def ln(x, w, b):
        mean = jnp.mean(x, axis=-1, keepdims=True)
        var = jnp.mean((x - mean) ** 2, axis=-1, keepdims=True)
        return (x - mean) / jnp.sqrt(var + _EPS) * w + b
    return fn(ln(x1, w1, b1), ln(x2, w2, b2))


if __name__ == "__main__":
    key = jax.random.PRNGKey(0)
    kx1, kx2, kx3, kx4, kp1, kp2 = jax.random.split(key, 6)

    fn = lambda a, b: a + 0.5 * b  # deterministic stand-in for the `fn` block

    # Case 1: small token tensors [B, N, D]; D=32 exercises the lane-packed path.
    B, N, D = 2, 8, 32
    x1 = jax.random.normal(kx1, (B, N, D), jnp.float32)
    x2 = jax.random.normal(kx2, (B, N, D), jnp.float32)
    mod = PreNorm2in(D, fn, kp1)
    out = jax.block_until_ready(mod(x1, x2))
    ref = _reference(x1, x2, mod.w1, mod.b1, mod.w2, mod.b2, fn)
    assert out.shape == (B, N, D)
    assert jnp.allclose(out, ref, atol=1e-4, rtol=1e-4), "mismatch (packed path)"

    # Case 2: production-like dim (multiple of 128 -> naturally lane-dense path).
    B2, N2, D2 = 1, 16, 256
    z1 = jax.random.normal(kx3, (B2, N2, D2), jnp.float32)
    z2 = jax.random.normal(kx4, (B2, N2, D2), jnp.float32)
    mod2 = PreNorm2in(D2, fn, kp2)
    out2 = jax.block_until_ready(mod2(z1, z2))
    ref2 = _reference(z1, z2, mod2.w1, mod2.b1, mod2.w2, mod2.b2, fn)
    assert out2.shape == (B2, N2, D2)
    assert jnp.allclose(out2, ref2, atol=1e-4, rtol=1e-4), "mismatch (dense path)"

    print("KERNEL_OK")
</pallas_src>

<mosaic_0001>
module attributes {stable_mosaic.version = 11 : i64} {
  func.func @kernel(%arg0: i32, %arg1: memref<8x128xf32, #tpu.memory_space<vmem>>, %arg2: memref<8x128xf32, #tpu.memory_space<vmem>>, %arg3: memref<1x128xf32, #tpu.memory_space<vmem>>, %arg4: memref<1x128xf32, #tpu.memory_space<vmem>>, %arg5: memref<1x128xf32, #tpu.memory_space<vmem>>, %arg6: memref<1x128xf32, #tpu.memory_space<vmem>>, %arg7: memref<8x128xf32, #tpu.memory_space<vmem>>, %arg8: memref<8x128xf32, #tpu.memory_space<vmem>>) attributes {dimension_semantics = [#tpu.dimension_semantics<parallel>], iteration_bounds = array<i64: 1>, scalar_prefetch = 0 : i64, scratch_operands = 0 : i64, tpu.core_type = #tpu.core_type<tc>, window_params = [{transform_indices = @transform_0, window_bounds = array<i64: 8, 128>}, {transform_indices = @transform_1, window_bounds = array<i64: 8, 128>}, {pipeline_mode = #tpu.pipeline_mode<synchronous>, transform_indices = @transform_2, window_bounds = array<i64: 1, 128>}, {pipeline_mode = #tpu.pipeline_mode<synchronous>, transform_indices = @transform_3, window_bounds = array<i64: 1, 128>}, {pipeline_mode = #tpu.pipeline_mode<synchronous>, transform_indices = @transform_4, window_bounds = array<i64: 1, 128>}, {pipeline_mode = #tpu.pipeline_mode<synchronous>, transform_indices = @transform_5, window_bounds = array<i64: 1, 128>}, {transform_indices = @transform_6, window_bounds = array<i64: 8, 128>}, {transform_indices = @transform_7, window_bounds = array<i64: 8, 128>}]} {
    %0 = tpu.iota {dimensions = array<i32: 1>} : vector<8x128xi32>
    %c1_i32 = arith.constant 1 : i32
    %1 = tpu.dynamic_rotate %0 by %c1_i32 dim 1 : vector<8x128xi32>, i32 -> vector<8x128xi32>
    %c1_i32_0 = arith.constant 1 : i32
    %2 = vector.broadcast %c1_i32_0 : i32 to vector<8x128xi32>
    %3 = arith.xori %0, %2 : vector<8x128xi32>
    %4 = arith.cmpi eq, %1, %3 : vector<8x128xi32>
    %c2_i32 = arith.constant 2 : i32
    %5 = tpu.dynamic_rotate %0 by %c2_i32 dim 1 : vector<8x128xi32>, i32 -> vector<8x128xi32>
    %c2_i32_1 = arith.constant 2 : i32
    %6 = vector.broadcast %c2_i32_1 : i32 to vector<8x128xi32>
    %7 = arith.xori %0, %6 : vector<8x128xi32>
    %8 = arith.cmpi eq, %5, %7 : vector<8x128xi32>
    %c4_i32 = arith.constant 4 : i32
    %9 = tpu.dynamic_rotate %0 by %c4_i32 dim 1 : vector<8x128xi32>, i32 -> vector<8x128xi32>
    %c4_i32_2 = arith.constant 4 : i32
    %10 = vector.broadcast %c4_i32_2 : i32 to vector<8x128xi32>
    %11 = arith.xori %0, %10 : vector<8x128xi32>
    %12 = arith.cmpi eq, %9, %11 : vector<8x128xi32>
    %c8_i32 = arith.constant 8 : i32
    %13 = tpu.dynamic_rotate %0 by %c8_i32 dim 1 : vector<8x128xi32>, i32 -> vector<8x128xi32>
    %c8_i32_3 = arith.constant 8 : i32
    %14 = vector.broadcast %c8_i32_3 : i32 to vector<8x128xi32>
    %15 = arith.xori %0, %14 : vector<8x128xi32>
    %16 = arith.cmpi eq, %13, %15 : vector<8x128xi32>
    %c16_i32 = arith.constant 16 : i32
    %17 = tpu.dynamic_rotate %0 by %c16_i32 dim 1 : vector<8x128xi32>, i32 -> vector<8x128xi32>
    %c16_i32_4 = arith.constant 16 : i32
    %18 = vector.broadcast %c16_i32_4 : i32 to vector<8x128xi32>
    %19 = arith.xori %0, %18 : vector<8x128xi32>
    %20 = arith.cmpi eq, %17, %19 : vector<8x128xi32>
    %c0 = arith.constant 0 : index
    %c0_5 = arith.constant 0 : index
    %21 = vector.load %arg1[%c0, %c0_5] : memref<8x128xf32, #tpu.memory_space<vmem>>, vector<8x128xf32>
    %c0_6 = arith.constant 0 : index
    %c0_7 = arith.constant 0 : index
    %22 = vector.load %arg3[%c0_6, %c0_7] : memref<1x128xf32, #tpu.memory_space<vmem>>, vector<1x128xf32>
    %c0_8 = arith.constant 0 : index
    %c0_9 = arith.constant 0 : index
    %23 = vector.load %arg4[%c0_8, %c0_9] : memref<1x128xf32, #tpu.memory_space<vmem>>, vector<1x128xf32>
    %c1_i32_10 = arith.constant 1 : i32
    %24 = tpu.dynamic_rotate %21 by %c1_i32_10 dim 1 : vector<8x128xf32>, i32 -> vector<8x128xf32>
    %c127_i32 = arith.constant 127 : i32
    %25 = tpu.dynamic_rotate %21 by %c127_i32 dim 1 : vector<8x128xf32>, i32 -> vector<8x128xf32>
    %26 = arith.select %4, %24, %25 : vector<8x128xi1>, vector<8x128xf32>
    %27 = arith.addf %21, %26 : vector<8x128xf32>
    %c2_i32_11 = arith.constant 2 : i32
    %28 = tpu.dynamic_rotate %27 by %c2_i32_11 dim 1 : vector<8x128xf32>, i32 -> vector<8x128xf32>
    %c126_i32 = arith.constant 126 : i32
    %29 = tpu.dynamic_rotate %27 by %c126_i32 dim 1 : vector<8x128xf32>, i32 -> vector<8x128xf32>
    %30 = arith.select %8, %28, %29 : vector<8x128xi1>, vector<8x128xf32>
    %31 = arith.addf %27, %30 : vector<8x128xf32>
    %c4_i32_12 = arith.constant 4 : i32
    %32 = tpu.dynamic_rotate %31 by %c4_i32_12 dim 1 : vector<8x128xf32>, i32 -> vector<8x128xf32>
    %c124_i32 = arith.constant 124 : i32
    %33 = tpu.dynamic_rotate %31 by %c124_i32 dim 1 : vector<8x128xf32>, i32 -> vector<8x128xf32>
    %34 = arith.select %12, %32, %33 : vector<8x128xi1>, vector<8x128xf32>
    %35 = arith.addf %31, %34 : vector<8x128xf32>
    %c8_i32_13 = arith.constant 8 : i32
    %36 = tpu.dynamic_rotate %35 by %c8_i32_13 dim 1 : vector<8x128xf32>, i32 -> vector<8x128xf32>
    %c120_i32 = arith.constant 120 : i32
    %37 = tpu.dynamic_rotate %35 by %c120_i32 dim 1 : vector<8x128xf32>, i32 -> vector<8x128xf32>
    %38 = arith.select %16, %36, %37 : vector<8x128xi1>, vector<8x128xf32>
    %39 = arith.addf %35, %38 : vector<8x128xf32>
    %c16_i32_14 = arith.constant 16 : i32
    %40 = tpu.dynamic_rotate %39 by %c16_i32_14 dim 1 : vector<8x128xf32>, i32 -> vector<8x128xf32>
    %c112_i32 = arith.constant 112 : i32
    %41 = tpu.dynamic_rotate %39 by %c112_i32 dim 1 : vector<8x128xf32>, i32 -> vector<8x128xf32>
    %42 = arith.select %20, %40, %41 : vector<8x128xi1>, vector<8x128xf32>
    %43 = arith.addf %39, %42 : vector<8x128xf32>
    %cst = arith.constant 3.125000e-02 : f32
    %44 = vector.broadcast %cst : f32 to vector<8x128xf32>
    %45 = arith.mulf %43, %44 : vector<8x128xf32>
    %46 = arith.subf %21, %45 : vector<8x128xf32>
    %47 = arith.mulf %46, %46 : vector<8x128xf32>
    %c1_i32_15 = arith.constant 1 : i32
    %48 = tpu.dynamic_rotate %47 by %c1_i32_15 dim 1 : vector<8x128xf32>, i32 -> vector<8x128xf32>
    %c127_i32_16 = arith.constant 127 : i32
    %49 = tpu.dynamic_rotate %47 by %c127_i32_16 dim 1 : vector<8x128xf32>, i32 -> vector<8x128xf32>
    %50 = arith.select %4, %48, %49 : vector<8x128xi1>, vector<8x128xf32>
    %51 = arith.addf %47, %50 : vector<8x128xf32>
    %c2_i32_17 = arith.constant 2 : i32
    %52 = tpu.dynamic_rotate %51 by %c2_i32_17 dim 1 : vector<8x128xf32>, i32 -> vector<8x128xf32>
    %c126_i32_18 = arith.constant 126 : i32
    %53 = tpu.dynamic_rotate %51 by %c126_i32_18 dim 1 : vector<8x128xf32>, i32 -> vector<8x128xf32>
    %54 = arith.select %8, %52, %53 : vector<8x128xi1>, vector<8x128xf32>
    %55 = arith.addf %51, %54 : vector<8x128xf32>
    %c4_i32_19 = arith.constant 4 : i32
    %56 = tpu.dynamic_rotate %55 by %c4_i32_19 dim 1 : vector<8x128xf32>, i32 -> vector<8x128xf32>
    %c124_i32_20 = arith.constant 124 : i32
    %57 = tpu.dynamic_rotate %55 by %c124_i32_20 dim 1 : vector<8x128xf32>, i32 -> vector<8x128xf32>
    %58 = arith.select %12, %56, %57 : vector<8x128xi1>, vector<8x128xf32>
    %59 = arith.addf %55, %58 : vector<8x128xf32>
    %c8_i32_21 = arith.constant 8 : i32
    %60 = tpu.dynamic_rotate %59 by %c8_i32_21 dim 1 : vector<8x128xf32>, i32 -> vector<8x128xf32>
    %c120_i32_22 = arith.constant 120 : i32
    %61 = tpu.dynamic_rotate %59 by %c120_i32_22 dim 1 : vector<8x128xf32>, i32 -> vector<8x128xf32>
    %62 = arith.select %16, %60, %61 : vector<8x128xi1>, vector<8x128xf32>
    %63 = arith.addf %59, %62 : vector<8x128xf32>
    %c16_i32_23 = arith.constant 16 : i32
    %64 = tpu.dynamic_rotate %63 by %c16_i32_23 dim 1 : vector<8x128xf32>, i32 -> vector<8x128xf32>
    %c112_i32_24 = arith.constant 112 : i32
    %65 = tpu.dynamic_rotate %63 by %c112_i32_24 dim 1 : vector<8x128xf32>, i32 -> vector<8x128xf32>
    %66 = arith.select %20, %64, %65 : vector<8x128xi1>, vector<8x128xf32>
    %67 = arith.addf %63, %66 : vector<8x128xf32>
    %cst_25 = arith.constant 3.125000e-02 : f32
    %68 = vector.broadcast %cst_25 : f32 to vector<8x128xf32>
    %69 = arith.mulf %67, %68 : vector<8x128xf32>
    %cst_26 = arith.constant 9.99999974E-6 : f32
    %70 = vector.broadcast %cst_26 : f32 to vector<8x128xf32>
    %71 = arith.addf %69, %70 : vector<8x128xf32>
    %72 = math.rsqrt %71 : vector<8x128xf32>
    %73 = arith.mulf %46, %72 : vector<8x128xf32>
    %74 = vector.broadcast %22 : vector<1x128xf32> to vector<8x128xf32>
    %75 = arith.mulf %73, %74 : vector<8x128xf32>
    %76 = vector.broadcast %23 : vector<1x128xf32> to vector<8x128xf32>
    %77 = arith.addf %75, %76 : vector<8x128xf32>
    %c0_27 = arith.constant 0 : index
    %c0_28 = arith.constant 0 : index
    %78 = vector.load %arg7[%c0_27, %c0_28] : memref<8x128xf32, #tpu.memory_space<vmem>>, vector<8x128xf32>
    tpu.vector_store %arg7[%c0_27, %c0_28], %77 {strides = array<i32>} : memref<8x128xf32, #tpu.memory_space<vmem>>, vector<8x128xf32>,
    %c0_29 = arith.constant 0 : index
    %c0_30 = arith.constant 0 : index
    %79 = vector.load %arg2[%c0_29, %c0_30] : memref<8x128xf32, #tpu.memory_space<vmem>>, vector<8x128xf32>
    %c0_31 = arith.constant 0 : index
    %c0_32 = arith.constant 0 : index
    %80 = vector.load %arg5[%c0_31, %c0_32] : memref<1x128xf32, #tpu.memory_space<vmem>>, vector<1x128xf32>
    %c0_33 = arith.constant 0 : index
    %c0_34 = arith.constant 0 : index
    %81 = vector.load %arg6[%c0_33, %c0_34] : memref<1x128xf32, #tpu.memory_space<vmem>>, vector<1x128xf32>
    %c1_i32_35 = arith.constant 1 : i32
    %82 = tpu.dynamic_rotate %79 by %c1_i32_35 dim 1 : vector<8x128xf32>, i32 -> vector<8x128xf32>
    %c127_i32_36 = arith.constant 127 : i32
    %83 = tpu.dynamic_rotate %79 by %c127_i32_36 dim 1 : vector<8x128xf32>, i32 -> vector<8x128xf32>
    %84 = arith.select %4, %82, %83 : vector<8x128xi1>, vector<8x128xf32>
    %85 = arith.addf %79, %84 : vector<8x128xf32>
    %c2_i32_37 = arith.constant 2 : i32
    %86 = tpu.dynamic_rotate %85 by %c2_i32_37 dim 1 : vector<8x128xf32>, i32 -> vector<8x128xf32>
    %c126_i32_38 = arith.constant 126 : i32
    %87 = tpu.dynamic_rotate %85 by %c126_i32_38 dim 1 : vector<8x128xf32>, i32 -> vector<8x128xf32>
    %88 = arith.select %8, %86, %87 : vector<8x128xi1>, vector<8x128xf32>
    %89 = arith.addf %85, %88 : vector<8x128xf32>
    %c4_i32_39 = arith.constant 4 : i32
    %90 = tpu.dynamic_rotate %89 by %c4_i32_39 dim 1 : vector<8x128xf32>, i32 -> vector<8x128xf32>
    %c124_i32_40 = arith.constant 124 : i32
    %91 = tpu.dynamic_rotate %89 by %c124_i32_40 dim 1 : vector<8x128xf32>, i32 -> vector<8x128xf32>
    %92 = arith.select %12, %90, %91 : vector<8x128xi1>, vector<8x128xf32>
    %93 = arith.addf %89, %92 : vector<8x128xf32>
    %c8_i32_41 = arith.constant 8 : i32
    %94 = tpu.dynamic_rotate %93 by %c8_i32_41 dim 1 : vector<8x128xf32>, i32 -> vector<8x128xf32>
    %c120_i32_42 = arith.constant 120 : i32
    %95 = tpu.dynamic_rotate %93 by %c120_i32_42 dim 1 : vector<8x128xf32>, i32 -> vector<8x128xf32>
    %96 = arith.select %16, %94, %95 : vector<8x128xi1>, vector<8x128xf32>
    %97 = arith.addf %93, %96 : vector<8x128xf32>
    %c16_i32_43 = arith.constant 16 : i32
    %98 = tpu.dynamic_rotate %97 by %c16_i32_43 dim 1 : vector<8x128xf32>, i32 -> vector<8x128xf32>
    %c112_i32_44 = arith.constant 112 : i32
    %99 = tpu.dynamic_rotate %97 by %c112_i32_44 dim 1 : vector<8x128xf32>, i32 -> vector<8x128xf32>
    %100 = arith.select %20, %98, %99 : vector<8x128xi1>, vector<8x128xf32>
    %101 = arith.addf %97, %100 : vector<8x128xf32>
    %cst_45 = arith.constant 3.125000e-02 : f32
    %102 = vector.broadcast %cst_45 : f32 to vector<8x128xf32>
    %103 = arith.mulf %101, %102 : vector<8x128xf32>
    %104 = arith.subf %79, %103 : vector<8x128xf32>
    %105 = arith.mulf %104, %104 : vector<8x128xf32>
    %c1_i32_46 = arith.constant 1 : i32
    %106 = tpu.dynamic_rotate %105 by %c1_i32_46 dim 1 : vector<8x128xf32>, i32 -> vector<8x128xf32>
    %c127_i32_47 = arith.constant 127 : i32
    %107 = tpu.dynamic_rotate %105 by %c127_i32_47 dim 1 : vector<8x128xf32>, i32 -> vector<8x128xf32>
    %108 = arith.select %4, %106, %107 : vector<8x128xi1>, vector<8x128xf32>
    %109 = arith.addf %105, %108 : vector<8x128xf32>
    %c2_i32_48 = arith.constant 2 : i32
    %110 = tpu.dynamic_rotate %109 by %c2_i32_48 dim 1 : vector<8x128xf32>, i32 -> vector<8x128xf32>
    %c126_i32_49 = arith.constant 126 : i32
    %111 = tpu.dynamic_rotate %109 by %c126_i32_49 dim 1 : vector<8x128xf32>, i32 -> vector<8x128xf32>
    %112 = arith.select %8, %110, %111 : vector<8x128xi1>, vector<8x128xf32>
    %113 = arith.addf %109, %112 : vector<8x128xf32>
    %c4_i32_50 = arith.constant 4 : i32
    %114 = tpu.dynamic_rotate %113 by %c4_i32_50 dim 1 : vector<8x128xf32>, i32 -> vector<8x128xf32>
    %c124_i32_51 = arith.constant 124 : i32
    %115 = tpu.dynamic_rotate %113 by %c124_i32_51 dim 1 : vector<8x128xf32>, i32 -> vector<8x128xf32>
    %116 = arith.select %12, %114, %115 : vector<8x128xi1>, vector<8x128xf32>
    %117 = arith.addf %113, %116 : vector<8x128xf32>
    %c8_i32_52 = arith.constant 8 : i32
    %118 = tpu.dynamic_rotate %117 by %c8_i32_52 dim 1 : vector<8x128xf32>, i32 -> vector<8x128xf32>
    %c120_i32_53 = arith.constant 120 : i32
    %119 = tpu.dynamic_rotate %117 by %c120_i32_53 dim 1 : vector<8x128xf32>, i32 -> vector<8x128xf32>
    %120 = arith.select %16, %118, %119 : vector<8x128xi1>, vector<8x128xf32>
    %121 = arith.addf %117, %120 : vector<8x128xf32>
    %c16_i32_54 = arith.constant 16 : i32
    %122 = tpu.dynamic_rotate %121 by %c16_i32_54 dim 1 : vector<8x128xf32>, i32 -> vector<8x128xf32>
    %c112_i32_55 = arith.constant 112 : i32
    %123 = tpu.dynamic_rotate %121 by %c112_i32_55 dim 1 : vector<8x128xf32>, i32 -> vector<8x128xf32>
    %124 = arith.select %20, %122, %123 : vector<8x128xi1>, vector<8x128xf32>
    %125 = arith.addf %121, %124 : vector<8x128xf32>
    %cst_56 = arith.constant 3.125000e-02 : f32
    %126 = vector.broadcast %cst_56 : f32 to vector<8x128xf32>
    %127 = arith.mulf %125, %126 : vector<8x128xf32>
    %cst_57 = arith.constant 9.99999974E-6 : f32
    %128 = vector.broadcast %cst_57 : f32 to vector<8x128xf32>
    %129 = arith.addf %127, %128 : vector<8x128xf32>
    %130 = math.rsqrt %129 : vector<8x128xf32>
    %131 = arith.mulf %104, %130 : vector<8x128xf32>
    %132 = vector.broadcast %80 : vector<1x128xf32> to vector<8x128xf32>
    %133 = arith.mulf %131, %132 : vector<8x128xf32>
    %134 = vector.broadcast %81 : vector<1x128xf32> to vector<8x128xf32>
    %135 = arith.addf %133, %134 : vector<8x128xf32>
    %c0_58 = arith.constant 0 : index
    %c0_59 = arith.constant 0 : index
    %136 = vector.load %arg8[%c0_58, %c0_59] : memref<8x128xf32, #tpu.memory_space<vmem>>, vector<8x128xf32>
    tpu.vector_store %arg8[%c0_58, %c0_59], %135 {strides = array<i32>} : memref<8x128xf32, #tpu.memory_space<vmem>>, vector<8x128xf32>,
    return
  }
  func.func @transform_0(%arg0: i32) -> (i32, i32) {
    %c0_i32 = arith.constant 0 : i32
    %c0_i32_0 = arith.constant 0 : i32
    return %arg0, %c0_i32 : i32, i32
  }
  func.func @transform_1(%arg0: i32) -> (i32, i32) {
    %c0_i32 = arith.constant 0 : i32
    %c0_i32_0 = arith.constant 0 : i32
    return %arg0, %c0_i32 : i32, i32
  }
  func.func @transform_2(%arg0: i32) -> (i32, i32) {
    %c0_i32 = arith.constant 0 : i32
    %c0_i32_0 = arith.constant 0 : i32
    %c0_i32_1 = arith.constant 0 : i32
    return %c0_i32, %c0_i32_0 : i32, i32
  }
  func.func @transform_3(%arg0: i32) -> (i32, i32) {
    %c0_i32 = arith.constant 0 : i32
    %c0_i32_0 = arith.constant 0 : i32
    %c0_i32_1 = arith.constant 0 : i32
    return %c0_i32, %c0_i32_0 : i32, i32
  }
  func.func @transform_4(%arg0: i32) -> (i32, i32) {
    %c0_i32 = arith.constant 0 : i32
    %c0_i32_0 = arith.constant 0 : i32
    %c0_i32_1 = arith.constant 0 : i32
    return %c0_i32, %c0_i32_0 : i32, i32
  }
  func.func @transform_5(%arg0: i32) -> (i32, i32) {
    %c0_i32 = arith.constant 0 : i32
    %c0_i32_0 = arith.constant 0 : i32
    %c0_i32_1 = arith.constant 0 : i32
    return %c0_i32, %c0_i32_0 : i32, i32
  }
  func.func @transform_6(%arg0: i32) -> (i32, i32) {
    %c0_i32 = arith.constant 0 : i32
    %c0_i32_0 = arith.constant 0 : i32
    return %arg0, %c0_i32 : i32, i32
  }
  func.func @transform_7(%arg0: i32) -> (i32, i32) {
    %c0_i32 = arith.constant 0 : i32
    %c0_i32_0 = arith.constant 0 : i32
    return %arg0, %c0_i32 : i32, i32
  }
}

</mosaic_0001>

<llo_original>
// kernel: tpu_custom_call.1
$region0: #{tpu_custom_call.1}
  #allocation0 [shape = 'u32[]', space=smem, size = 0x4, offset = 0x4, fixed_abs, tag = 'smem constant byte address 0x4 - core index']
  #allocation1 [shape = 'u32[144,128]{1,0:T(1,128)}', space=vmem, size = 0x12000, scoped, tag = 'internal scratch']
  %s0 = inlined_call_operand.hbm [shape: f32[8,128], index: 0, kind: input, shape index: {}]
  %s1 = inlined_call_operand.hbm [shape: f32[8,128], index: 1, kind: input, shape index: {}]
  %s2 = inlined_call_operand.vmem [shape: f32[1,128], index: 2, kind: input, shape index: {}]
  %s3 = inlined_call_operand.vmem [shape: f32[1,128], index: 3, kind: input, shape index: {}]
  %s4 = inlined_call_operand.vmem [shape: f32[1,128], index: 4, kind: input, shape index: {}]
  %s5 = inlined_call_operand.vmem [shape: f32[1,128], index: 5, kind: input, shape index: {}]
  %s6 = inlined_call_operand.hbm [shape: f32[8,128], index: 6, kind: output, shape index: {0}]
  %s7 = inlined_call_operand.hbm [shape: f32[8,128], index: 7, kind: output, shape index: {1}]
  %8 = xla_tuple %s6, %s7
  %s9 = sld [smem:[#allocation0]]
  $region50: #{tpu_custom_call.1} parent=0
    _
  %s11 = ssub.s32 1, %s9
  %s12 = scalar_select 0, %s11, %s9
  $region1: #{tpu_custom_call.1} parent=0
    #allocation2 [shape = 'u8[4096]{0}', space=vmem, size = 0x1000, scoped, tag = 'input window, operand 0, single buffered']
    #allocation3 [shape = 's32[1]{0}', space=sflag, size = 0x4, scoped, tag = 'scoped memory for tpu_custom_call.1']
    #allocation4 [shape = 's32[1]{0}', space=sflag, size = 0x4, scoped, tag = 'scoped memory for tpu_custom_call.1']
    #allocation5 [shape = 'u8[4096]{0}', space=vmem, size = 0x1000, scoped, tag = 'input window, operand 1, single buffered']
    #allocation6 [shape = 's32[1]{0}', space=sflag, size = 0x4, scoped, tag = 'scoped memory for tpu_custom_call.1']
    #allocation7 [shape = 'u8[4096]{0}', space=vmem, size = 0x1000, scoped, tag = 'output window, operand 0, single buffered']
    #allocation8 [shape = 'u8[4096]{0}', space=vmem, size = 0x1000, scoped, tag = 'output window, operand 1, single buffered']
    #allocation9 [shape = 's32[1]{0}', space=sflag, size = 0x4, scoped, tag = 'scoped memory for tpu_custom_call.1']
    %13 = vsyncpa [#allocation3], 0
    %14 = vsyncpa [#allocation6], 0
    %15 = vsyncpa [#allocation4], 0
    %16 = vsyncpa [#allocation9], 0
    // Predicated region
    $region2: #{tpu_custom_call.1} parent=1 // pred_check
      _
    $region3: #{tpu_custom_call.1} parent=1 // pred_check_branch
      %18 = sbr.rel (0) target = $region5
    $region4: #{tpu_custom_call.1} parent=1 // pred_region
      %s20 = ssub.s32 128, 128
      %21 = vsyncadd [#allocation3], %s20
      %s23 = sshll.u32 [#allocation2], 4
      %s24 = int_to_ptr.vmem [resolvable:$true] %s23
      %26 = dma.hbm_to_vmem [thread:$0]  %s0, 128, %s24, [#allocation3]
    $region5: #{tpu_custom_call.1} parent=1 // pred_fallthru
      _
    // Predicated region
    $region6: #{tpu_custom_call.1} parent=1 // pred_check
      _
    $region7: #{tpu_custom_call.1} parent=1 // pred_check_branch
      %28 = sbr.rel (0) target = $region9
    $region8: #{tpu_custom_call.1} parent=1 // pred_region
      %s30 = ssub.s32 128, 128
      %31 = vsyncadd [#allocation6], %s30
      %s33 = sshll.u32 [#allocation5], 4
      %s34 = int_to_ptr.vmem [resolvable:$true] %s33
      %36 = dma.hbm_to_vmem [thread:$0]  %s1, 128, %s34, [#allocation6]
    $region9: #{tpu_custom_call.1} parent=1 // pred_fallthru
      _
    // Predicated region
    $region10: #{tpu_custom_call.1} parent=1 // pred_check
      _
    $region11: #{tpu_custom_call.1} parent=1 // pred_check_branch
      %38 = sbr.rel (0) target = $region13
    $region12: #{tpu_custom_call.1} parent=1 // pred_region
      _
    $region13: #{tpu_custom_call.1} parent=1 // pred_fallthru
      _
    // Predicated region
    $region14: #{tpu_custom_call.1} parent=1 // pred_check
      _
    $region15: #{tpu_custom_call.1} parent=1 // pred_check_branch
      %40 = sbr.rel (0) target = $region17
    $region16: #{tpu_custom_call.1} parent=1 // pred_region
      _
    $region17: #{tpu_custom_call.1} parent=1 // pred_fallthru
      _
    // Predicated region
    $region18: #{tpu_custom_call.1} parent=1 // pred_check
      _
    $region19: #{tpu_custom_call.1} parent=1 // pred_check_branch
      %42 = sbr.rel (0) target = $region21
    $region20: #{tpu_custom_call.1} parent=1 // pred_region
      _
    $region21: #{tpu_custom_call.1} parent=1 // pred_fallthru
      _
    // Predicated region
    $region22: #{tpu_custom_call.1} parent=1 // pred_check
      _
    $region23: #{tpu_custom_call.1} parent=1 // pred_check_branch
      %44 = sbr.rel (0) target = $region25
    $region24: #{tpu_custom_call.1} parent=1 // pred_region
      _
    $region25: #{tpu_custom_call.1} parent=1 // pred_fallthru
      _
    // Predicated region
    $region26: #{tpu_custom_call.1} parent=1 // pred_check
      _
    $region27: #{tpu_custom_call.1} parent=1 // pred_check_branch
      %46 = sbr.rel (0) target = $region29
    $region28: #{tpu_custom_call.1} parent=1 // pred_region
      %47 = dma.done [#allocation3], 128
    $region29: #{tpu_custom_call.1} parent=1 // pred_fallthru
      _
    // Predicated region
    $region30: #{tpu_custom_call.1} parent=1 // pred_check
      _
    $region31: #{tpu_custom_call.1} parent=1 // pred_check_branch
      %49 = sbr.rel (0) target = $region33
    $region32: #{tpu_custom_call.1} parent=1 // pred_region
      %50 = dma.done [#allocation6], 128
    $region33: #{tpu_custom_call.1} parent=1 // pred_fallthru
      _
    %v51 = vlaneseq
    %v52 = vand.u32 %v51, 127
    %53 = vrot.lane.b32.xlu0 %v52, 1
    %v54 = vpop.permute.xlu0 %53
    %v55 = vxor.u32 %v52, 1
    %vm56 = vcmp.eq.s32.totalorder %v54, %v55
    %57 = vrot.lane.b32.xlu0 %v52, 2
    %v58 = vpop.permute.xlu0 %57
    %v59 = vxor.u32 %v52, 2
    %vm60 = vcmp.eq.s32.totalorder %v58, %v59
    %61 = vrot.lane.b32.xlu0 %v52, 4
    %v62 = vpop.permute.xlu0 %61
    %v63 = vxor.u32 %v52, 4
    %vm64 = vcmp.eq.s32.totalorder %v62, %v63
    %65 = vrot.lane.b32.xlu0 %v52, 8
    %v66 = vpop.permute.xlu0 %65
    %v67 = vxor.u32 %v52, 8
    %vm68 = vcmp.eq.s32.totalorder %v66, %v67
    %69 = vrot.lane.b32.xlu0 %v52, 16
    %v70 = vpop.permute.xlu0 %69
    %v71 = vxor.u32 %v52, 16
    %vm72 = vcmp.eq.s32.totalorder %v70, %v71
    %v73 = vld [vmem:[#allocation2] sm:$0xff]
    %v74 = vld [vmem:[%s2] sm:$0x1]
    %v75 = vld [vmem:[%s3] sm:$0x1]
    %76 = vrot.lane.b32.xlu0 %v73, 1
    %v77 = vpop.permute.xlu0 %76
    %78 = vrot.lane.b32.xlu0 %v73, 127
    %v79 = vpop.permute.xlu0 %78
    %v80 = vsel %vm56, %v77, %v79
    %v81 = vadd.f32 %v73, %v80
    %82 = vrot.lane.b32.xlu0 %v81, 2
    %v83 = vpop.permute.xlu0 %82
    %84 = vrot.lane.b32.xlu0 %v81, 126
    %v85 = vpop.permute.xlu0 %84
    %v86 = vsel %vm60, %v83, %v85
    %v87 = vadd.f32 %v81, %v86
    %88 = vrot.lane.b32.xlu0 %v87, 4
    %v89 = vpop.permute.xlu0 %88
    %90 = vrot.lane.b32.xlu0 %v87, 124
    %v91 = vpop.permute.xlu0 %90
    %v92 = vsel %vm64, %v89, %v91
    %v93 = vadd.f32 %v87, %v92
    %94 = vrot.lane.b32.xlu0 %v93, 8
    %v95 = vpop.permute.xlu0 %94
    %96 = vrot.lane.b32.xlu0 %v93, 120
    %v97 = vpop.permute.xlu0 %96
    %v98 = vsel %vm68, %v95, %v97
    %v99 = vadd.f32 %v93, %v98
    %100 = vrot.lane.b32.xlu0 %v99, 16
    %v101 = vpop.permute.xlu0 %100
    %102 = vrot.lane.b32.xlu0 %v99, 112
    %v103 = vpop.permute.xlu0 %102
    %v104 = vsel %vm72, %v101, %v103
    %v105 = vadd.f32 %v99, %v104
    %v106 = vmul.f32 %v105, 0.03125
    %v107 = vsub.f32 %v73, %v106
    %v108 = vmul.f32 %v107, %v107
    %109 = vrot.lane.b32.xlu0 %v108, 1
    %v110 = vpop.permute.xlu0 %109
    %111 = vrot.lane.b32.xlu0 %v108, 127
    %v112 = vpop.permute.xlu0 %111
    %v113 = vsel %vm56, %v110, %v112
    %v114 = vadd.f32 %v108, %v113
    %115 = vrot.lane.b32.xlu0 %v114, 2
    %v116 = vpop.permute.xlu0 %115
    %117 = vrot.lane.b32.xlu0 %v114, 126
    %v118 = vpop.permute.xlu0 %117
    %v119 = vsel %vm60, %v116, %v118
    %v120 = vadd.f32 %v114, %v119
    %121 = vrot.lane.b32.xlu0 %v120, 4
    %v122 = vpop.permute.xlu0 %121
    %123 = vrot.lane.b32.xlu0 %v120, 124
    %v124 = vpop.permute.xlu0 %123
    %v125 = vsel %vm64, %v122, %v124
    %v126 = vadd.f32 %v120, %v125
    %127 = vrot.lane.b32.xlu0 %v126, 8
    %v128 = vpop.permute.xlu0 %127
    %129 = vrot.lane.b32.xlu0 %v126, 120
    %v130 = vpop.permute.xlu0 %129
    %v131 = vsel %vm68, %v128, %v130
    %v132 = vadd.f32 %v126, %v131
    %133 = vrot.lane.b32.xlu0 %v132, 16
    %v134 = vpop.permute.xlu0 %133
    %135 = vrot.lane.b32.xlu0 %v132, 112
    %v136 = vpop.permute.xlu0 %135
    %v137 = vsel %vm72, %v134, %v136
    %v138 = vadd.f32 %v132, %v137
    %v139 = vmul.f32 %v138, 0.03125
    %v140 = vadd.f32 %v139, 1e-05
    %v141 = vrsqrt.pop %v140
    %v142 = vmul.f32 %v107, %v141
    %v144 = vlaneseq
    %v145 = vshrl.u32 %v144, 7
    %v146 = vsub.s32 0, %v145
    %v147 = vrot.slane %v74, %v146
    %v149 = vmul.f32 %v142, %v147
    %v151 = vlaneseq
    %v152 = vshrl.u32 %v151, 7
    %v153 = vsub.s32 0, %v152
    %v154 = vrot.slane %v75, %v153
    %v156 = vadd.f32 %v149, %v154
    %157 = vst [vmem:[#allocation7] sm:$0xff] %v156
    %v158 = vld [vmem:[#allocation5] sm:$0xff]
    %v159 = vld [vmem:[%s4] sm:$0x1]
    %v160 = vld [vmem:[%s5] sm:$0x1]
    %161 = vrot.lane.b32.xlu0 %v158, 1
    %v162 = vpop.permute.xlu0 %161
    %163 = vrot.lane.b32.xlu0 %v158, 127
    %v164 = vpop.permute.xlu0 %163
    %v165 = vsel %vm56, %v162, %v164
    %v166 = vadd.f32 %v158, %v165
    %167 = vrot.lane.b32.xlu0 %v166, 2
    %v168 = vpop.permute.xlu0 %167
    %169 = vrot.lane.b32.xlu0 %v166, 126
    %v170 = vpop.permute.xlu0 %169
    %v171 = vsel %vm60, %v168, %v170
    %v172 = vadd.f32 %v166, %v171
    %173 = vrot.lane.b32.xlu0 %v172, 4
    %v174 = vpop.permute.xlu0 %173
    %175 = vrot.lane.b32.xlu0 %v172, 124
    %v176 = vpop.permute.xlu0 %175
    %v177 = vsel %vm64, %v174, %v176
    %v178 = vadd.f32 %v172, %v177
    %179 = vrot.lane.b32.xlu0 %v178, 8
    %v180 = vpop.permute.xlu0 %179
    %181 = vrot.lane.b32.xlu0 %v178, 120
    %v182 = vpop.permute.xlu0 %181
    %v183 = vsel %vm68, %v180, %v182
    %v184 = vadd.f32 %v178, %v183
    %185 = vrot.lane.b32.xlu0 %v184, 16
    %v186 = vpop.permute.xlu0 %185
    %187 = vrot.lane.b32.xlu0 %v184, 112
    %v188 = vpop.permute.xlu0 %187
    %v189 = vsel %vm72, %v186, %v188
    %v190 = vadd.f32 %v184, %v189
    %v191 = vmul.f32 %v190, 0.03125
    %v192 = vsub.f32 %v158, %v191
    %v193 = vmul.f32 %v192, %v192
    %194 = vrot.lane.b32.xlu0 %v193, 1
    %v195 = vpop.permute.xlu0 %194
    %196 = vrot.lane.b32.xlu0 %v193, 127
    %v197 = vpop.permute.xlu0 %196
    %v198 = vsel %vm56, %v195, %v197
    %v199 = vadd.f32 %v193, %v198
    %200 = vrot.lane.b32.xlu0 %v199, 2
    %v201 = vpop.permute.xlu0 %200
    %202 = vrot.lane.b32.xlu0 %v199, 126
    %v203 = vpop.permute.xlu0 %202
    %v204 = vsel %vm60, %v201, %v203
    %v205 = vadd.f32 %v199, %v204
    %206 = vrot.lane.b32.xlu0 %v205, 4
    %v207 = vpop.permute.xlu0 %206
    %208 = vrot.lane.b32.xlu0 %v205, 124
    %v209 = vpop.permute.xlu0 %208
    %v210 = vsel %vm64, %v207, %v209
    %v211 = vadd.f32 %v205, %v210
    %212 = vrot.lane.b32.xlu0 %v211, 8
    %v213 = vpop.permute.xlu0 %212
    %214 = vrot.lane.b32.xlu0 %v211, 120
    %v215 = vpop.permute.xlu0 %214
    %v216 = vsel %vm68, %v213, %v215
    %v217 = vadd.f32 %v211, %v216
    %218 = vrot.lane.b32.xlu0 %v217, 16
    %v219 = vpop.permute.xlu0 %218
    %220 = vrot.lane.b32.xlu0 %v217, 112
    %v221 = vpop.permute.xlu0 %220
    %v222 = vsel %vm72, %v219, %v221
    %v223 = vadd.f32 %v217, %v222
    %v224 = vmul.f32 %v223, 0.03125
    %v225 = vadd.f32 %v224, 1e-05
    %v226 = vrsqrt.pop %v225
    %v227 = vmul.f32 %v192, %v226
    %v229 = vlaneseq
    %v230 = vshrl.u32 %v229, 7
    %v231 = vsub.s32 0, %v230
    %v232 = vrot.slane %v159, %v231
    %v234 = vmul.f32 %v227, %v232
    %v236 = vlaneseq
    %v237 = vshrl.u32 %v236, 7
    %v238 = vsub.s32 0, %v237
    %v239 = vrot.slane %v160, %v238
    %v241 = vadd.f32 %v234, %v239
    %242 = vst [vmem:[#allocation8] sm:$0xff] %v241
    // Predicated region
    $region34: #{tpu_custom_call.1} parent=1 // pred_check
      _
    $region35: #{tpu_custom_call.1} parent=1 // pred_check_branch
      %244 = sbr.rel (0) target = $region37
    $region36: #{tpu_custom_call.1} parent=1 // pred_region
      %s246 = ssub.s32 128, 128
      %247 = vsyncadd [#allocation4], %s246
      %s249 = sshll.u32 [#allocation7], 4
      %s250 = int_to_ptr.vmem [resolvable:$true] %s249
      %252 = dma.vmem_to_hbm [thread:$0]  %s250, 128, %s6, [#allocation4]
    $region37: #{tpu_custom_call.1} parent=1 // pred_fallthru
      _
    // Predicated region
    $region38: #{tpu_custom_call.1} parent=1 // pred_check
      _
    $region39: #{tpu_custom_call.1} parent=1 // pred_check_branch
      %254 = sbr.rel (0) target = $region41
    $region40: #{tpu_custom_call.1} parent=1 // pred_region
      %s256 = ssub.s32 128, 128
      %257 = vsyncadd [#allocation9], %s256
      %s259 = sshll.u32 [#allocation8], 4
      %s260 = int_to_ptr.vmem [resolvable:$true] %s259
      %262 = dma.vmem_to_hbm [thread:$0]  %s260, 128, %s7, [#allocation9]
    $region41: #{tpu_custom_call.1} parent=1 // pred_fallthru
      _
    // Predicated region
    $region42: #{tpu_custom_call.1} parent=1 // pred_check
      _
    $region43: #{tpu_custom_call.1} parent=1 // pred_check_branch
      %264 = sbr.rel (0) target = $region45
    $region44: #{tpu_custom_call.1} parent=1 // pred_region
      %265 = dma.done [#allocation4], 128
    $region45: #{tpu_custom_call.1} parent=1 // pred_fallthru
      _
    // Predicated region
    $region46: #{tpu_custom_call.1} parent=1 // pred_check
      _
    $region47: #{tpu_custom_call.1} parent=1 // pred_check_branch
      %267 = sbr.rel (0) target = $region49
    $region48: #{tpu_custom_call.1} parent=1 // pred_region
      %268 = dma.done [#allocation9], 128
    $region49: #{tpu_custom_call.1} parent=1 // pred_fallthru
      _
    %269 = vsyncpa [#allocation3], 1
    %270 = vsyncpa [#allocation6], 1
    %271 = vsyncpa [#allocation4], 1
    %272 = vsyncpa [#allocation9], 1

</llo_original>
